<compile_context>
chip_gen: v7x
topology: tpu7x:2x2x1
jax: 0.10.0
libtpu: 0.0.40
codegen_flags: <defaults>
</compile_context>

<pallas_src>
import functools

import jax
import jax.numpy as jnp
from jax.experimental import pallas as pl
from jax.experimental.pallas import tpu as pltpu

LANE = 128


def _round_up(x, m):
    return -(-x // m) * m


def _pick_tile_rows(hw, cap=1024):
    """Largest multiple-of-8 divisor of hw that is <= cap (fallback: hw)."""
    cap = min(cap, hw)
    start = cap - (cap % 8)
    for t in range(start, 7, -8):
        if hw % t == 0:
            return t
    return hw


def torchvision_net_kernel(patches_ref, wc_ref, bc_ref, wf_ref, bf_ref,
                           out_ref, emb_ref, acc_ref, *, inv_hw):
    t = pl.program_id(1)

    # New batch -> reset the pooling accumulator.
    @pl.when(t == 0)
    def _():
        acc_ref[...] = jnp.zeros_like(acc_ref)

    # Conv-as-matmul for this row tile (bf16 MXU, f32 accumulation) + bias + ReLU.
    feat = jnp.dot(patches_ref[0], wc_ref[...],
                   preferred_element_type=jnp.float32)       # (TILE_ROWS, F_pad)
    feat = jnp.maximum(feat + bc_ref[...], 0.0)               # f32 epilogue

    # AdaptiveAvgPool2d(1): running per-batch row-sum (VPU/XLU, free under the matmul).
    acc_ref[...] += jnp.sum(feat, axis=0, keepdims=True)      # (1, F_pad)

    # Last row tile of this batch: finish the pool and run the FC head.
    @pl.when(t == pl.num_programs(1) - 1)
    def _():
        pooled = acc_ref[...] * inv_hw                        # (1, F_pad) f32
        emb_ref[0] = pooled
        logits = jnp.dot(pooled.astype(wf_ref.dtype), wf_ref[...],
                         preferred_element_type=jnp.float32) + bf_ref[...]
        out_ref[0] = logits


def torchvision_net_forward(x_nchw, wc, bc, wf, bf, *, tile_rows=None):
    """x_nchw: (B, C, H, W); wc: (F, C, K, K) OIHW; bc: (F,); wf: (NC, F); bf: (NC,)."""
    B, C, H, W = x_nchw.shape
    F_out, _, K, _ = wc.shape
    num_classes = wf.shape[0]
    pad = K // 2
    HW = H * W

    Kc = K * K * C
    Kc_pad = _round_up(Kc, LANE)
    F_pad = _round_up(F_out, LANE)
    NC_pad = _round_up(num_classes, LANE)

    if tile_rows is None:
        tile_rows = _pick_tile_rows(HW)
    assert HW % tile_rows == 0
    num_tiles = HW // tile_rows

    # --- glue: im2col patch extraction (plain JAX; rows batch-major/H/W, cols kh,kw,cin) ---
    # TODO(synk): for very large inputs, fuse the 3x3 conv as K*K shifted accumulating dots
    # over raw NHWC tiles inside the kernel to avoid the K*K im2col DMA blow-up.
    x = jnp.transpose(x_nchw, (0, 2, 3, 1))                          # NHWC
    xp = jnp.pad(x, ((0, 0), (pad, pad), (pad, pad), (0, 0)))
    cols = [xp[:, dy:dy + H, dx:dx + W, :] for dy in range(K) for dx in range(K)]
    patches = jnp.stack(cols, axis=3).reshape(B, HW, Kc)             # (B, HW, K*K*C)
    patches = jnp.pad(patches, ((0, 0), (0, 0), (0, Kc_pad - Kc)))
    patches = patches.astype(jnp.bfloat16)

    # conv weight OIHW -> (KH*KW*Cin, Cout), zero-padded to lane-dense shapes.
    wc_mat = jnp.transpose(wc, (2, 3, 1, 0)).reshape(Kc, F_out)
    wc_mat = jnp.pad(wc_mat, ((0, Kc_pad - Kc), (0, F_pad - F_out))).astype(jnp.bfloat16)
    bc_row = jnp.pad(bc, (0, F_pad - F_out)).reshape(1, F_pad).astype(jnp.float32)
    wf_mat = jnp.pad(jnp.transpose(wf),
                     ((0, F_pad - F_out), (0, NC_pad - num_classes))).astype(jnp.bfloat16)
    bf_row = jnp.pad(bf, (0, NC_pad - num_classes)).reshape(1, NC_pad).astype(jnp.float32)

    kernel = functools.partial(torchvision_net_kernel, inv_hw=1.0 / float(HW))

    cost = pl.CostEstimate(
        flops=2 * B * HW * Kc_pad * F_pad + 2 * B * F_pad * NC_pad,
        transcendentals=0,
        bytes_accessed=(patches.size * 2 + wc_mat.size * 2 + bc_row.size * 4
                        + wf_mat.size * 2 + bf_row.size * 4
                        + B * NC_pad * 4 + B * F_pad * 4),
    )

    out_p, emb_p = pl.pallas_call(
        kernel,
        out_shape=(jax.ShapeDtypeStruct((B, 1, NC_pad), jnp.float32),
                   jax.ShapeDtypeStruct((B, 1, F_pad), jnp.float32)),
        grid_spec=pltpu.PrefetchScalarGridSpec(
            num_scalar_prefetch=0,
            grid=(B, num_tiles),
            in_specs=[
                pl.BlockSpec((1, tile_rows, Kc_pad), lambda b, t: (b, t, 0)),  # patches tile
                pl.BlockSpec((Kc_pad, F_pad), lambda b, t: (0, 0)),            # conv weight
                pl.BlockSpec((1, F_pad), lambda b, t: (0, 0)),                 # conv bias
                pl.BlockSpec((F_pad, NC_pad), lambda b, t: (0, 0)),            # fc weight
                pl.BlockSpec((1, NC_pad), lambda b, t: (0, 0)),                # fc bias
            ],
            out_specs=(pl.BlockSpec((1, 1, NC_pad), lambda b, t: (b, 0, 0)),   # logits
                       pl.BlockSpec((1, 1, F_pad), lambda b, t: (b, 0, 0))),   # embedding e1
            scratch_shapes=[pltpu.VMEM((1, F_pad), jnp.float32)],              # pool accum
        ),
        compiler_params=pltpu.CompilerParams(
            dimension_semantics=("parallel", "arbitrary"),
            vmem_limit_bytes=32 * 1024 * 1024,
        ),
        cost_estimate=cost,
    )(patches, wc_mat, bc_row, wf_mat, bf_row)

    out = out_p.reshape(B, NC_pad)[:, :num_classes]
    emb = emb_p.reshape(B, F_pad)[:, :F_out]
    return out, emb


def reference_forward(x_nchw, wc, bc, wf, bf):
    """Pure-JAX reference matching the PyTorch semantics."""
    y = jax.lax.conv_general_dilated(
        x_nchw, wc, window_strides=(1, 1), padding="SAME",
        dimension_numbers=("NCHW", "OIHW", "NCHW"))
    y = jnp.maximum(y + bc.reshape(1, -1, 1, 1), 0.0)
    e1 = jnp.mean(y, axis=(2, 3))          # AdaptiveAvgPool2d(1) then flatten(., 1)
    return e1 @ wf.T + bf, e1


if __name__ == "__main__":
    B, C, H, W = 2, 4, 16, 16
    F_out, K, NUM_CLASSES = 8, 3, 10

    key = jax.random.PRNGKey(0)
    kx, kwc, kbc, kwf, kbf = jax.random.split(key, 5)
    x = jax.random.normal(kx, (B, C, H, W), jnp.float32)
    wc = jax.random.normal(kwc, (F_out, C, K, K), jnp.float32) * 0.1
    bc = jax.random.normal(kbc, (F_out,), jnp.float32) * 0.1
    wf = jax.random.normal(kwf, (NUM_CLASSES, F_out), jnp.float32) * 0.1
    bf = jax.random.normal(kbf, (NUM_CLASSES,), jnp.float32) * 0.1

    # tile_rows=64 -> grid (B, 4): exercises accumulator init / accumulate / finalize.
    out, emb = torchvision_net_forward(x, wc, bc, wf, bf, tile_rows=64)
    out = jax.block_until_ready(out)
    emb = jax.block_until_ready(emb)

    out_ref, emb_ref = reference_forward(x, wc, bc, wf, bf)
    assert out.shape == (B, NUM_CLASSES) and emb.shape == (B, F_out)
    assert jnp.allclose(out, out_ref, rtol=1e-2, atol=1e-2)
    assert jnp.allclose(emb, emb_ref, rtol=1e-2, atol=1e-2)
    print("KERNEL_OK")
</pallas_src>

<mosaic_0001>
module attributes {stable_mosaic.version = 11 : i64} {
  func.func @torchvision_net_kernel(%arg0: i32, %arg1: i32, %arg2: memref<1x64x128xbf16, #tpu.memory_space<vmem>>, %arg3: memref<128x128xbf16, #tpu.memory_space<vmem>>, %arg4: memref<1x128xf32, #tpu.memory_space<vmem>>, %arg5: memref<128x128xbf16, #tpu.memory_space<vmem>>, %arg6: memref<1x128xf32, #tpu.memory_space<vmem>>, %arg7: memref<1x1x128xf32, #tpu.memory_space<vmem>>, %arg8: memref<1x1x128xf32, #tpu.memory_space<vmem>>, %arg9: memref<1x128xf32, #tpu.memory_space<vmem>>) attributes {dimension_semantics = [#tpu.dimension_semantics<parallel>, #tpu.dimension_semantics<arbitrary>], iteration_bounds = array<i64: 2, 4>, scalar_prefetch = 0 : i64, scratch_operands = 1 : i64, tpu.core_type = #tpu.core_type<tc>, window_params = [{transform_indices = @transform_0, window_bounds = array<i64: 1, 64, 128>}, {pipeline_mode = #tpu.pipeline_mode<synchronous>, transform_indices = @transform_1, window_bounds = array<i64: 128, 128>}, {pipeline_mode = #tpu.pipeline_mode<synchronous>, transform_indices = @transform_2, window_bounds = array<i64: 1, 128>}, {pipeline_mode = #tpu.pipeline_mode<synchronous>, transform_indices = @transform_3, window_bounds = array<i64: 128, 128>}, {pipeline_mode = #tpu.pipeline_mode<synchronous>, transform_indices = @transform_4, window_bounds = array<i64: 1, 128>}, {transform_indices = @transform_5, window_bounds = array<i64: 1, 1, 128>}, {transform_indices = @transform_6, window_bounds = array<i64: 1, 1, 128>}]} {
    %c0_i32 = arith.constant 0 : i32
    %0 = arith.cmpi eq, %arg1, %c0_i32 : i32
    %1 = arith.extui %0 : i1 to i32
    %c0_i32_0 = arith.constant 0 : i32
    %2 = arith.cmpi ne, %1, %c0_i32_0 : i32
    scf.if %2 {
      %cst_14 = arith.constant 0.000000e+00 : f32
      %20 = vector.broadcast %cst_14 : f32 to vector<1x128xf32>
      %c0_15 = arith.constant 0 : index
      %c0_16 = arith.constant 0 : index
      %21 = vector.load %arg9[%c0_15, %c0_16] : memref<1x128xf32, #tpu.memory_space<vmem>>, vector<1x128xf32>
      tpu.vector_store %arg9[%c0_15, %c0_16], %20 {strides = array<i32>} : memref<1x128xf32, #tpu.memory_space<vmem>>, vector<1x128xf32>,
    } else {
    }
    %c0 = arith.constant 0 : index
    %c0_1 = arith.constant 0 : index
    %c0_2 = arith.constant 0 : index
    %3 = vector.load %arg2[%c0, %c0_1, %c0_2] : memref<1x64x128xbf16, #tpu.memory_space<vmem>>, vector<1x64x128xbf16>
    %4 = vector.shape_cast %3 : vector<1x64x128xbf16> to vector<64x128xbf16>
    %c0_3 = arith.constant 0 : index
    %c0_4 = arith.constant 0 : index
    %5 = vector.load %arg3[%c0_3, %c0_4] : memref<128x128xbf16, #tpu.memory_space<vmem>>, vector<128x128xbf16>
    %cst = arith.constant dense<0.000000e+00> : vector<64x128xf32>
    %6 = tpu.matmul %4, %5, %cst {dimension_numbers = #tpu.dot_dimension_numbers<[1], [0], [0], [1], [0, 0, 1, 1], [], []>} : vector<64x128xbf16>, vector<128x128xbf16>, vector<64x128xf32> -> vector<64x128xf32>
    %c0_5 = arith.constant 0 : index
    %c0_6 = arith.constant 0 : index
    %7 = vector.load %arg4[%c0_5, %c0_6] : memref<1x128xf32, #tpu.memory_space<vmem>>, vector<1x128xf32>
    %8 = vector.broadcast %7 : vector<1x128xf32> to vector<64x128xf32>
    %9 = arith.addf %6, %8 : vector<64x128xf32>
    %cst_7 = arith.constant 0.000000e+00 : f32
    %10 = vector.broadcast %cst_7 : f32 to vector<64x128xf32>
    %11 = arith.maximumf %9, %10 : vector<64x128xf32>
    %c0_8 = arith.constant 0 : index
    %c0_9 = arith.constant 0 : index
    %12 = vector.load %arg9[%c0_8, %c0_9] : memref<1x128xf32, #tpu.memory_space<vmem>>, vector<1x128xf32>
    %cst_10 = arith.constant dense<0.000000e+00> : vector<128xf32>
    %13 = vector.multi_reduction <add>, %11, %cst_10 [0] : vector<64x128xf32> to vector<128xf32>
    %14 = vector.shape_cast %13 : vector<128xf32> to vector<1x128xf32>
    %15 = arith.addf %12, %14 : vector<1x128xf32>
    %c0_11 = arith.constant 0 : index
    %c0_12 = arith.constant 0 : index
    %16 = vector.load %arg9[%c0_11, %c0_12] : memref<1x128xf32, #tpu.memory_space<vmem>>, vector<1x128xf32>
    tpu.vector_store %arg9[%c0_11, %c0_12], %15 {strides = array<i32>} : memref<1x128xf32, #tpu.memory_space<vmem>>, vector<1x128xf32>,
    %c3_i32 = arith.constant 3 : i32
    %17 = arith.cmpi eq, %arg1, %c3_i32 : i32
    %18 = arith.extui %17 : i1 to i32
    %c0_i32_13 = arith.constant 0 : i32
    %19 = arith.cmpi ne, %18, %c0_i32_13 : i32
    scf.if %19 {
      %c0_14 = arith.constant 0 : index
      %c0_15 = arith.constant 0 : index
      %20 = vector.load %arg9[%c0_14, %c0_15] : memref<1x128xf32, #tpu.memory_space<vmem>>, vector<1x128xf32>
      %cst_16 = arith.constant 3.906250e-03 : f32
      %21 = vector.broadcast %cst_16 : f32 to vector<1x128xf32>
      %22 = arith.mulf %20, %21 : vector<1x128xf32>
      %c0_17 = arith.constant 0 : index
      %c0_18 = arith.constant 0 : index
      %c0_19 = arith.constant 0 : index
      %23 = vector.load %arg8[%c0_17, %c0_18, %c0_19] : memref<1x1x128xf32, #tpu.memory_space<vmem>>, vector<1x1x128xf32>
      %24 = vector.shape_cast %23 : vector<1x1x128xf32> to vector<1x128xf32>
      %25 = vector.shape_cast %22 : vector<1x128xf32> to vector<1x1x128xf32>
      tpu.vector_store %arg8[%c0_17, %c0_18, %c0_19], %25 {strides = array<i32>} : memref<1x1x128xf32, #tpu.memory_space<vmem>>, vector<1x1x128xf32>,
      %26 = arith.truncf %22 : vector<1x128xf32> to vector<1x128xbf16>
      %c0_20 = arith.constant 0 : index
      %c0_21 = arith.constant 0 : index
      %27 = vector.load %arg5[%c0_20, %c0_21] : memref<128x128xbf16, #tpu.memory_space<vmem>>, vector<128x128xbf16>
      %cst_22 = arith.constant dense<0.000000e+00> : vector<1x128xf32>
      %28 = tpu.matmul %26, %27, %cst_22 {dimension_numbers = #tpu.dot_dimension_numbers<[1], [0], [0], [1], [0, 0, 1, 1], [], []>} : vector<1x128xbf16>, vector<128x128xbf16>, vector<1x128xf32> -> vector<1x128xf32>
      %c0_23 = arith.constant 0 : index
      %c0_24 = arith.constant 0 : index
      %29 = vector.load %arg6[%c0_23, %c0_24] : memref<1x128xf32, #tpu.memory_space<vmem>>, vector<1x128xf32>
      %30 = arith.addf %28, %29 : vector<1x128xf32>
      %c0_25 = arith.constant 0 : index
      %c0_26 = arith.constant 0 : index
      %c0_27 = arith.constant 0 : index
      %31 = vector.load %arg7[%c0_25, %c0_26, %c0_27] : memref<1x1x128xf32, #tpu.memory_space<vmem>>, vector<1x1x128xf32>
      %32 = vector.shape_cast %31 : vector<1x1x128xf32> to vector<1x128xf32>
      %33 = vector.shape_cast %30 : vector<1x128xf32> to vector<1x1x128xf32>
      tpu.vector_store %arg7[%c0_25, %c0_26, %c0_27], %33 {strides = array<i32>} : memref<1x1x128xf32, #tpu.memory_space<vmem>>, vector<1x1x128xf32>,
    } else {
    }
    return
  }
  func.func @transform_0(%arg0: i32, %arg1: i32) -> (i32, i32, i32) {
    %c0_i32 = arith.constant 0 : i32
    %c0_i32_0 = arith.constant 0 : i32
    return %arg0, %arg1, %c0_i32 : i32, i32, i32
  }
  func.func @transform_1(%arg0: i32, %arg1: i32) -> (i32, i32) {
    %c0_i32 = arith.constant 0 : i32
    %c0_i32_0 = arith.constant 0 : i32
    %c0_i32_1 = arith.constant 0 : i32
    return %c0_i32, %c0_i32_0 : i32, i32
  }
  func.func @transform_2(%arg0: i32, %arg1: i32) -> (i32, i32) {
    %c0_i32 = arith.constant 0 : i32
    %c0_i32_0 = arith.constant 0 : i32
    %c0_i32_1 = arith.constant 0 : i32
    return %c0_i32, %c0_i32_0 : i32, i32
  }
  func.func @transform_3(%arg0: i32, %arg1: i32) -> (i32, i32) {
    %c0_i32 = arith.constant 0 : i32
    %c0_i32_0 = arith.constant 0 : i32
    %c0_i32_1 = arith.constant 0 : i32
    return %c0_i32, %c0_i32_0 : i32, i32
  }
  func.func @transform_4(%arg0: i32, %arg1: i32) -> (i32, i32) {
    %c0_i32 = arith.constant 0 : i32
    %c0_i32_0 = arith.constant 0 : i32
    %c0_i32_1 = arith.constant 0 : i32
    return %c0_i32, %c0_i32_0 : i32, i32
  }
  func.func @transform_5(%arg0: i32, %arg1: i32) -> (i32, i32, i32) {
    %c0_i32 = arith.constant 0 : i32
    %c0_i32_0 = arith.constant 0 : i32
    %c0_i32_1 = arith.constant 0 : i32
    return %arg0, %c0_i32, %c0_i32_0 : i32, i32, i32
  }
  func.func @transform_6(%arg0: i32, %arg1: i32) -> (i32, i32, i32) {
    %c0_i32 = arith.constant 0 : i32
    %c0_i32_0 = arith.constant 0 : i32
    %c0_i32_1 = arith.constant 0 : i32
    return %arg0, %c0_i32, %c0_i32_0 : i32, i32, i32
  }
}

</mosaic_0001>

<llo_original>
// kernel: tpu_custom_call.1
$region0: #{tpu_custom_call.1}
  #allocation0 [shape = 'u32[]', space=smem, size = 0x4, offset = 0x4, fixed_abs, tag = 'smem constant byte address 0x4 - core index']
  #allocation1 [shape = 'u32[144,128]{1,0:T(1,128)}', space=vmem, size = 0x12000, scoped, tag = 'internal scratch']
  #allocation2 [shape = 'f32[1,128]{1,0:T(1,128)}', space=vmem, size = 0x200, scoped, tag = 'scratch operand']
  %s0 = inlined_call_operand.hbm [shape: bf16[2,256,128], index: 0, kind: input, shape index: {}]
  %s1 = inlined_call_operand.hbm [shape: bf16[128,128], index: 1, kind: input, shape index: {}]
  %s2 = inlined_call_operand.vmem [shape: f32[1,128], index: 2, kind: input, shape index: {}]
  %s3 = inlined_call_operand.hbm [shape: bf16[128,128], index: 3, kind: input, shape index: {}]
  %s4 = inlined_call_operand.vmem [shape: f32[1,128], index: 4, kind: input, shape index: {}]
  %s5 = inlined_call_operand.hbm [shape: f32[2,1,128], index: 5, kind: output, shape index: {0}]
  %s6 = inlined_call_operand.hbm [shape: f32[2,1,128], index: 6, kind: output, shape index: {1}]
  %7 = xla_tuple %s5, %s6
  %s8 = sld [smem:[#allocation0]]
  $region81: #{tpu_custom_call.1} parent=0
    _
  %s10 = ssub.s32 1, %s8
  %s11 = scalar_select 0, %s10, %s8
  $region1: #{tpu_custom_call.1} parent=0
    #allocation3 [shape = 'u8[32768]{0}', space=vmem, size = 0x8000, scoped, tag = 'input window, operand 0']
    #allocation4 [shape = 's32[2]{0}', space=sflag, size = 0x8, scoped, tag = 'scoped memory for tpu_custom_call.1']
    #allocation5 [shape = 's32[2]{0}', space=sflag, size = 0x8, scoped, tag = 'scoped memory for tpu_custom_call.1']
    #allocation6 [shape = 'u8[32768]{0}', space=vmem, size = 0x8000, scoped, tag = 'input window, operand 1, single buffered']
    #allocation7 [shape = 's32[1]{0}', space=sflag, size = 0x4, scoped, tag = 'scoped memory for tpu_custom_call.1']
    #allocation8 [shape = 'u8[32768]{0}', space=vmem, size = 0x8000, scoped, tag = 'input window, operand 3, single buffered']
    #allocation9 [shape = 'u8[1024]{0}', space=vmem, size = 0x400, scoped, tag = 'output window, operand 0']
    #allocation10 [shape = 'u8[1024]{0}', space=vmem, size = 0x400, scoped, tag = 'output window, operand 1']
    #allocation11 [shape = 's32[2]{0}', space=sflag, size = 0x8, scoped, tag = 'scoped memory for tpu_custom_call.1']
    %12 = vsyncpa [#allocation4], 0
    %s13 = scalar_lea.sflag [#allocation4], 1
    %14 = vsyncpa %s13, 0
    %15 = vsyncpa [#allocation7], 0
    %16 = vsyncpa [#allocation5], 0
    %s17 = scalar_lea.sflag [#allocation5], 1
    %18 = vsyncpa %s17, 0
    %19 = vsyncpa [#allocation11], 0
    %s20 = scalar_lea.sflag [#allocation11], 1
    %21 = vsyncpa %s20, 0
    loop: start=0, step=1, limit=10
    $region2: #{tpu_custom_call.1} parent=1 // loop_pre_header
      _
    $region3: #{tpu_custom_call.1} parent=1 // loop_header
      %s23 = sphi 0, %s27
      %p24 = scmp.ge.s32.totalorder %s23, 10
      %s30 = sphi 0, %s42
      %s31 = sphi 0, %s38
      %s32 = sphi 0, %s30
      %s33 = sphi 0, %s31
      %s34 = sphi 0, %s32
      %s35 = sphi 0, %s33
      %s47 = sphi 0, %s49
      %s50 = sphi 0, %s47
      %s51 = sphi 0, %s50
      %s67 = sphi 0, %s51
      %s71 = sphi 0, %s71
      %s73 = sphi 0, %s71
      %s74 = sphi 0, %s73
      %s88 = sphi 0, %s74
      %s92 = sphi 0, %s92
      %s94 = sphi 0, %s92
      %s95 = sphi 0, %s94
      %s109 = sphi 0, %s95
      %s113 = sphi 0, %s113
      %s115 = sphi 0, %s113
      %s116 = sphi 0, %s115
      %s130 = sphi 0, %s116
      %s134 = sphi 0, %s134
      %s136 = sphi 0, %s134
      %s137 = sphi 0, %s136
      %s151 = sphi 0, %s137
      %s157 = sphi 0, %s159
      %s160 = sphi 0, %s157
      %s161 = sphi 0, %s160
      %s177 = sphi 0, %s161
      %s183 = sphi 0, %s185
      %s186 = sphi 0, %s183
      %s187 = sphi 0, %s186
      %s203 = sphi 0, %s187
    $region4: #{tpu_custom_call.1} parent=1 // loop_header_branch
      %26 = sbr.rel (%p24) target = $region8
    $region5: #{tpu_custom_call.1} parent=1 // loop_body
      %s28 = ssub.s32 %s23, 1
      %s29 = ssub.s32 %s23, 2
      %s36 = sadd.s32 1, %s31
      %p37 = scmp.ge.s32.totalorder %s36, 4
      %s38 = scalar_select %p37, 0, %s36
      %s39 = sadd.s32 1, %s30
      %s40 = scalar_select %p37, %s39, %s30
      %p41 = scmp.ge.s32.totalorder %s40, 2
      %s42 = scalar_select %p41, 0, %s40
      %s43 = ssub.s32 %s30, %s42
      %s44 = ssub.s32 %s31, %s38
      %s45 = sor.u32 %s43, %s44
      %p46 = scmp.eq.s32.totalorder %s45, 0
      %s48 = sadd.s32 %s47, 1
      %s49 = scalar_select %p46, %s47, %s48
      %p52 = pneg %p46
      %p53 = scmp.eq.s32.totalorder %s23, 7
      %p54 = por %p52, %p53
      %p55 = scmp.ne.s32.totalorder %s47, %s50
      %p56 = scmp.eq.s32.totalorder %s23, 0
      %p57 = por %p55, %p56
      %p58 = scmp.ne.s32.totalorder %s47, %s50
      %p59 = scmp.eq.s32.totalorder %s28, 7
      %p60 = por %p58, %p59
      %p61 = scmp.ne.s32.totalorder %s50, %s51
      %p62 = scmp.eq.s32.totalorder %s28, 0
      %p63 = por %p61, %p62
      %p64 = scmp.ne.s32.totalorder %s50, %s51
      %p65 = scmp.eq.s32.totalorder %s29, 7
      %p66 = por %p64, %p65
      %p68 = scmp.ne.s32.totalorder %s51, %s67
      %p69 = scmp.eq.s32.totalorder %s29, 0
      %p70 = por %p68, %p69
      %s72 = sadd.s32 %s71, 1
      %p75 = scmp.eq.s32.totalorder %s23, 7
      %p76 = scmp.ne.s32.totalorder %s71, %s73
      %p77 = scmp.eq.s32.totalorder %s23, 0
      %p78 = por %p76, %p77
      %p79 = scmp.ne.s32.totalorder %s71, %s73
      %p80 = scmp.eq.s32.totalorder %s28, 7
      %p81 = por %p79, %p80
      %p82 = scmp.ne.s32.totalorder %s73, %s74
      %p83 = scmp.eq.s32.totalorder %s28, 0
      %p84 = por %p82, %p83
      %p85 = scmp.ne.s32.totalorder %s73, %s74
      %p86 = scmp.eq.s32.totalorder %s29, 7
      %p87 = por %p85, %p86
      %p89 = scmp.ne.s32.totalorder %s74, %s88
      %p90 = scmp.eq.s32.totalorder %s29, 0
      %p91 = por %p89, %p90
      %s93 = sadd.s32 %s92, 1
      %p96 = scmp.eq.s32.totalorder %s23, 7
      %p97 = scmp.ne.s32.totalorder %s92, %s94
      %p98 = scmp.eq.s32.totalorder %s23, 0
      %p99 = por %p97, %p98
      %p100 = scmp.ne.s32.totalorder %s92, %s94
      %p101 = scmp.eq.s32.totalorder %s28, 7
      %p102 = por %p100, %p101
      %p103 = scmp.ne.s32.totalorder %s94, %s95
      %p104 = scmp.eq.s32.totalorder %s28, 0
      %p105 = por %p103, %p104
      %p106 = scmp.ne.s32.totalorder %s94, %s95
      %p107 = scmp.eq.s32.totalorder %s29, 7
      %p108 = por %p106, %p107
      %p110 = scmp.ne.s32.totalorder %s95, %s109
      %p111 = scmp.eq.s32.totalorder %s29, 0
      %p112 = por %p110, %p111
      %s114 = sadd.s32 %s113, 1
      %p117 = scmp.eq.s32.totalorder %s23, 7
      %p118 = scmp.ne.s32.totalorder %s113, %s115
      %p119 = scmp.eq.s32.totalorder %s23, 0
      %p120 = por %p118, %p119
      %p121 = scmp.ne.s32.totalorder %s113, %s115
      %p122 = scmp.eq.s32.totalorder %s28, 7
      %p123 = por %p121, %p122
      %p124 = scmp.ne.s32.totalorder %s115, %s116
      %p125 = scmp.eq.s32.totalorder %s28, 0
      %p126 = por %p124, %p125
      %p127 = scmp.ne.s32.totalorder %s115, %s116
      %p128 = scmp.eq.s32.totalorder %s29, 7
      %p129 = por %p127, %p128
      %p131 = scmp.ne.s32.totalorder %s116, %s130
      %p132 = scmp.eq.s32.totalorder %s29, 0
      %p133 = por %p131, %p132
      %s135 = sadd.s32 %s134, 1
      %p138 = scmp.eq.s32.totalorder %s23, 7
      %p139 = scmp.ne.s32.totalorder %s134, %s136
      %p140 = scmp.eq.s32.totalorder %s23, 0
      %p141 = por %p139, %p140
      %p142 = scmp.ne.s32.totalorder %s134, %s136
      %p143 = scmp.eq.s32.totalorder %s28, 7
      %p144 = por %p142, %p143
      %p145 = scmp.ne.s32.totalorder %s136, %s137
      %p146 = scmp.eq.s32.totalorder %s28, 0
      %p147 = por %p145, %p146
      %p148 = scmp.ne.s32.totalorder %s136, %s137
      %p149 = scmp.eq.s32.totalorder %s29, 7
      %p150 = por %p148, %p149
      %p152 = scmp.ne.s32.totalorder %s137, %s151
      %p153 = scmp.eq.s32.totalorder %s29, 0
      %p154 = por %p152, %p153
      %s155 = ssub.s32 %s30, %s42
      %p156 = scmp.eq.s32.totalorder %s155, 0
      %s158 = sadd.s32 %s157, 1
      %s159 = scalar_select %p156, %s157, %s158
      %p162 = pneg %p156
      %p163 = scmp.eq.s32.totalorder %s23, 7
      %p164 = por %p162, %p163
      %p165 = scmp.ne.s32.totalorder %s157, %s160
      %p166 = scmp.eq.s32.totalorder %s23, 0
      %p167 = por %p165, %p166
      %p168 = scmp.ne.s32.totalorder %s157, %s160
      %p169 = scmp.eq.s32.totalorder %s28, 7
      %p170 = por %p168, %p169
      %p171 = scmp.ne.s32.totalorder %s160, %s161
      %p172 = scmp.eq.s32.totalorder %s28, 0
      %p173 = por %p171, %p172
      %p174 = scmp.ne.s32.totalorder %s160, %s161
      %p175 = scmp.eq.s32.totalorder %s29, 7
      %p176 = por %p174, %p175
      %p178 = scmp.ne.s32.totalorder %s161, %s177
      %p179 = scmp.eq.s32.totalorder %s29, 0
      %p180 = por %p178, %p179
      %s181 = ssub.s32 %s30, %s42
      %p182 = scmp.eq.s32.totalorder %s181, 0
      %s184 = sadd.s32 %s183, 1
      %s185 = scalar_select %p182, %s183, %s184
      %p188 = pneg %p182
      %p189 = scmp.eq.s32.totalorder %s23, 7
      %p190 = por %p188, %p189
      %p191 = scmp.ne.s32.totalorder %s183, %s186
      %p192 = scmp.eq.s32.totalorder %s23, 0
      %p193 = por %p191, %p192
      %p194 = scmp.ne.s32.totalorder %s183, %s186
      %p195 = scmp.eq.s32.totalorder %s28, 7
      %p196 = por %p194, %p195
      %p197 = scmp.ne.s32.totalorder %s186, %s187
      %p198 = scmp.eq.s32.totalorder %s28, 0
      %p199 = por %p197, %p198
      %p200 = scmp.ne.s32.totalorder %s186, %s187
      %p201 = scmp.eq.s32.totalorder %s29, 7
      %p202 = por %p200, %p201
      %p204 = scmp.ne.s32.totalorder %s187, %s203
      %p205 = scmp.eq.s32.totalorder %s29, 0
      %p206 = por %p204, %p205
      %p207 = scmp.le.s32.totalorder 1, %s23
      %p208 = scmp.lt.s32.totalorder %s23, 9
      %p209 = pnand %p207, %p208
      %p210 = pneg %p209
      // Predicated region
      $region9: #{tpu_custom_call.1} parent=5 // pred_check
        _
      $region10: #{tpu_custom_call.1} parent=5 // pred_check_branch
        %212 = sbr.rel (%p209) target = $region12
      $region11: #{tpu_custom_call.1} parent=5 // pred_region
        %s213 = ssub.s32 %s23, 1
        // Predicated region
        $region13: #{tpu_custom_call.1} parent=11 // pred_check
          %p214 = pneg %p84
        $region14: #{tpu_custom_call.1} parent=11 // pred_check_branch
          %216 = sbr.rel (%p214) target = $region16
        $region15: #{tpu_custom_call.1} parent=11 // pred_region
          %s218 = ssub.s32 1024, 1024
          %219 = vsyncadd [#allocation7], %s218
          %s220 = sshll.u32 [#allocation6], 4
          %s221 = int_to_ptr.vmem [resolvable:$true] %s220
          %226 = dma.hbm_to_vmem [thread:$0]  %s1, 1024, %s221, [#allocation7], 64, 64, 4
        $region16: #{tpu_custom_call.1} parent=11 // pred_fallthru
          _
        // Predicated region
        $region17: #{tpu_custom_call.1} parent=11 // pred_check
          %p227 = pneg %p105
        $region18: #{tpu_custom_call.1} parent=11 // pred_check_branch
          %229 = sbr.rel (%p227) target = $region20
        $region19: #{tpu_custom_call.1} parent=11 // pred_region
          _
        $region20: #{tpu_custom_call.1} parent=11 // pred_fallthru
          _
        // Predicated region
        $region21: #{tpu_custom_call.1} parent=11 // pred_check
          %p230 = pneg %p126
        $region22: #{tpu_custom_call.1} parent=11 // pred_check_branch
          %232 = sbr.rel (%p230) target = $region24
        $region23: #{tpu_custom_call.1} parent=11 // pred_region
          %s234 = ssub.s32 1024, 1024
          %235 = vsyncadd [#allocation7], %s234
          %s236 = sshll.u32 [#allocation8], 4
          %s237 = int_to_ptr.vmem [resolvable:$true] %s236
          %242 = dma.hbm_to_vmem [thread:$0]  %s3, 1024, %s237, [#allocation7], 64, 64, 4
        $region24: #{tpu_custom_call.1} parent=11 // pred_fallthru
          _
        // Predicated region
        $region25: #{tpu_custom_call.1} parent=11 // pred_check
          %p243 = pneg %p147
        $region26: #{tpu_custom_call.1} parent=11 // pred_check_branch
          %245 = sbr.rel (%p243) target = $region28
        $region27: #{tpu_custom_call.1} parent=11 // pred_region
          _
        $region28: #{tpu_custom_call.1} parent=11 // pred_fallthru
          _
      $region12: #{tpu_custom_call.1} parent=5 // pred_fallthru
        _
      %p246 = scmp.lt.s32.totalorder %s23, 8
      // Predicated region
      $region29: #{tpu_custom_call.1} parent=5 // pred_check
        %p247 = pneg %p246
      $region30: #{tpu_custom_call.1} parent=5 // pred_check_branch
        %249 = sbr.rel (%p247) target = $region32
      $region31: #{tpu_custom_call.1} parent=5 // pred_region
        // Predicated region
        $region33: #{tpu_custom_call.1} parent=31 // pred_check
          %p250 = pneg %p57
        $region34: #{tpu_custom_call.1} parent=31 // pred_check_branch
          %252 = sbr.rel (%p250) target = $region36
        $region35: #{tpu_custom_call.1} parent=31 // pred_region
          %s253 = sand.u32 %s47, 1
          %s254 = scalar_lea.sflag [#allocation4], %s253
          %s255 = sand.u32 %s47, 1
          %s256 = smul.addr %s255, 32
          %s257 = scalar_lea.vmem [#allocation3], %s256
          %s258 = smul.u32 8, %s31
          %s260 = ssub.s32 512, 512
          %261 = vsyncadd %s254, %s260
          %s262 = smul.addr %s30, 32
          %s263 = sadd.s32 %s258, %s262
          %s264 = smul.addr %s263, 64
          %s265 = scalar_lea.hbm %s0, %s264
          %s266 = sshll.u32 %s257, 4
          %s267 = int_to_ptr.vmem [resolvable:$true] %s266
          %272 = dma.hbm_to_vmem [thread:$0]  %s265, 512, %s267, %s254, 64, 64, 4
        $region36: #{tpu_custom_call.1} parent=31 // pred_fallthru
          _
      $region32: #{tpu_custom_call.1} parent=5 // pred_fallthru
        _
      %p273 = scmp.le.s32.totalorder 1, %s23
      %p274 = scmp.lt.s32.totalorder %s23, 9
      %p275 = pnand %p273, %p274
      %p276 = pneg %p275
      // Predicated region
      $region37: #{tpu_custom_call.1} parent=5 // pred_check
        _
      $region38: #{tpu_custom_call.1} parent=5 // pred_check_branch
        %278 = sbr.rel (%p275) target = $region40
      $region39: #{tpu_custom_call.1} parent=5 // pred_region
        %s279 = ssub.s32 %s23, 1
        %s280 = sand.u32 %s50, 1
        %s281 = scalar_lea.sflag [#allocation4], %s280
        %s282 = sand.u32 %s50, 1
        %s283 = smul.addr %s282, 32
        %s284 = scalar_lea.vmem [#allocation3], %s283
        // Predicated region
        $region41: #{tpu_custom_call.1} parent=39 // pred_check
          %p285 = pneg %p63
        $region42: #{tpu_custom_call.1} parent=39 // pred_check_branch
          %287 = sbr.rel (%p285) target = $region44
        $region43: #{tpu_custom_call.1} parent=39 // pred_region
          %288 = dma.done %s281, 512
        $region44: #{tpu_custom_call.1} parent=39 // pred_fallthru
          _
        // Predicated region
        $region45: #{tpu_custom_call.1} parent=39 // pred_check
          %p289 = pneg %p84
        $region46: #{tpu_custom_call.1} parent=39 // pred_check_branch
          %291 = sbr.rel (%p289) target = $region48
        $region47: #{tpu_custom_call.1} parent=39 // pred_region
          %292 = dma.done [#allocation7], 1024
        $region48: #{tpu_custom_call.1} parent=39 // pred_fallthru
          _
        // Predicated region
        $region49: #{tpu_custom_call.1} parent=39 // pred_check
          %p293 = pneg %p126
        $region50: #{tpu_custom_call.1} parent=39 // pred_check_branch
          %295 = sbr.rel (%p293) target = $region52
        $region51: #{tpu_custom_call.1} parent=39 // pred_region
          %296 = dma.done [#allocation7], 1024
        $region52: #{tpu_custom_call.1} parent=39 // pred_fallthru
          _
        %s297 = sand.u32 %s50, 1
        %s298 = scalar_lea.sflag [#allocation4], %s297
        %s299 = sand.u32 %s50, 1
        %s300 = smul.addr %s299, 32
        %s301 = scalar_lea.vmem [#allocation3], %s300
        %p302 = pneg %p63
        %p303 = pneg %p60
        %p304 = pneg %p84
        %p305 = pneg %p81
        %p306 = pneg %p105
        %p307 = pneg %p102
        %p308 = pneg %p126
        %p309 = pneg %p123
        %p310 = pneg %p147
        %p311 = pneg %p144
        %p312 = pneg %p173
        %p313 = pneg %p170
        %s314 = sand.u32 %s160, 1
        %s315 = scalar_lea.sflag [#allocation5], %s314
        %s316 = sand.u32 %s160, 1
        %s317 = scalar_lea.vmem [#allocation9], %s316
        %p318 = pneg %p199
        %p319 = pneg %p196
        %s320 = sand.u32 %s186, 1
        %s321 = scalar_lea.sflag [#allocation11], %s320
        %s322 = sand.u32 %s186, 1
        %s323 = scalar_lea.vmem [#allocation10], %s322
        %s324 = smul.u32 8, %s33
        %p326 = scmp.eq.s32.totalorder %s33, 0
        // Predicated region
        $region53: #{tpu_custom_call.1} parent=39 // pred_check
          %p327 = pneg %p326
        $region54: #{tpu_custom_call.1} parent=39 // pred_check_branch
          %329 = sbr.rel (%p327) target = $region56
        $region55: #{tpu_custom_call.1} parent=39 // pred_region
          %330 = vst [vmem:[#allocation2] sm:$0x1] 0.0
        $region56: #{tpu_custom_call.1} parent=39 // pred_fallthru
          _
        %v331 = vld [vmem:[%s284] sm:$0xf]
        %v332 = vld [vmem:[%s284 + $0x4] sm:$0xf]
        %v333 = vld [vmem:[%s284 + $0x8] sm:$0xf]
        %v334 = vld [vmem:[%s284 + $0xc] sm:$0xf]
        %v335 = vld [vmem:[%s284 + $0x10] sm:$0xf]
        %v336 = vld [vmem:[%s284 + $0x14] sm:$0xf]
        %v337 = vld [vmem:[%s284 + $0x18] sm:$0xf]
        %v338 = vld [vmem:[%s284 + $0x1c] sm:$0xf]
        %v339 = vld [vmem:[#allocation6] sm:$0xf]
        %v340 = vld [vmem:[#allocation6 + $0x4] sm:$0xf]
        %v341 = vld [vmem:[#allocation6 + $0x8] sm:$0xf]
        %v342 = vld [vmem:[#allocation6 + $0xc] sm:$0xf]
        %v343 = vld [vmem:[#allocation6 + $0x10] sm:$0xf]
        %v344 = vld [vmem:[#allocation6 + $0x14] sm:$0xf]
        %v345 = vld [vmem:[#allocation6 + $0x18] sm:$0xf]
        %v346 = vld [vmem:[#allocation6 + $0x1c] sm:$0xf]
        %v347 = vld [vmem:[#allocation6 + $0x20] sm:$0xf]
        %v348 = vld [vmem:[#allocation6 + $0x24] sm:$0xf]
        %v349 = vld [vmem:[#allocation6 + $0x28] sm:$0xf]
        %v350 = vld [vmem:[#allocation6 + $0x2c] sm:$0xf]
        %v351 = vld [vmem:[#allocation6 + $0x30] sm:$0xf]
        %v352 = vld [vmem:[#allocation6 + $0x34] sm:$0xf]
        %v353 = vld [vmem:[#allocation6 + $0x38] sm:$0xf]
        %v354 = vld [vmem:[#allocation6 + $0x3c] sm:$0xf]
        %v355 = vld [vmem:[%s2] sm:$0x1]
        %v357 = vlaneseq
        %v358 = vshrl.u32 %v357, 7
        %v359 = vsub.s32 0, %v358
        %v360 = vrot.slane %v355, %v359
        %v370 = vunpack.c.l.b16 %v331
        %v371 = vunpack.c.l.b16 %v332
        %v372 = vunpack.c.l.b16 %v333
        %v373 = vunpack.c.l.b16 %v334
        %v374 = vunpack.c.l.b16 %v335
        %v375 = vunpack.c.l.b16 %v336
        %v376 = vunpack.c.l.b16 %v337
        %v377 = vunpack.c.l.b16 %v338
        %v378 = vpack.c.b16 %v371, %v370
        %v379 = vpack.c.b16 %v373, %v372
        %v380 = vpack.c.b16 %v375, %v374
        %v381 = vpack.c.b16 %v377, %v376
        %v402 = vunpack.c.l.b16 %v339
        %v403 = vunpack.c.l.b16 %v340
        %v404 = vunpack.c.l.b16 %v341
        %v405 = vunpack.c.l.b16 %v342
        %v406 = vunpack.c.l.b16 %v343
        %v407 = vunpack.c.l.b16 %v344
        %v408 = vunpack.c.l.b16 %v345
        %v409 = vunpack.c.l.b16 %v346
        %v410 = vunpack.c.l.b16 %v347
        %v411 = vunpack.c.l.b16 %v348
        %v412 = vunpack.c.l.b16 %v349
        %v413 = vunpack.c.l.b16 %v350
        %v414 = vunpack.c.l.b16 %v351
        %v415 = vunpack.c.l.b16 %v352
        %v416 = vunpack.c.l.b16 %v353
        %v417 = vunpack.c.l.b16 %v354
        %v418 = vpack.c.b16 %v403, %v402
        %v419 = vpack.c.b16 %v405, %v404
        %v420 = vpack.c.b16 %v407, %v406
        %v421 = vpack.c.b16 %v409, %v408
        %v422 = vpack.c.b16 %v411, %v410
        %v423 = vpack.c.b16 %v413, %v412
        %v424 = vpack.c.b16 %v415, %v414
        %v425 = vpack.c.b16 %v417, %v416
        %434 = vmatprep.subr.bf16.mxu0 0
        %435 = vmatpush1.bf16.msra.mxu0 %v418
        %436 = vmatprep.subr.bf16.mxu0 0
        %437 = vmatpush1.bf16.msra.mxu0 %v419
        %438 = vmatprep.subr.bf16.mxu0 0
        %439 = vmatpush1.bf16.msra.mxu0 %v420
        %440 = vmatprep.subr.bf16.mxu0 0
        %441 = vmatpush1.bf16.msra.mxu0 %v421
        %442 = vmatprep.subr.bf16.mxu0 0
        %443 = vmatpush1.bf16.msra.mxu0 %v422
        %444 = vmatprep.subr.bf16.mxu0 0
        %445 = vmatpush1.bf16.msra.mxu0 %v423
        %446 = vmatprep.subr.bf16.mxu0 0
        %447 = vmatpush1.bf16.msra.mxu0 %v424
        %448 = vmatprep.subr.bf16.mxu0 0
        %449 = vmatpush1.bf16.msra.mxu0 %v425
        %450 = vmatprep.subr.bf16.mxu0 0
        %451 = vmatpush1.bf16.msra.mxu0 0
        %452 = vmatprep.subr.bf16.mxu0 0
        %453 = vmatpush1.bf16.msra.mxu0 0
        %454 = vmatprep.subr.bf16.mxu0 0
        %455 = vmatpush1.bf16.msra.mxu0 0
        %456 = vmatprep.subr.bf16.mxu0 0
        %457 = vmatpush1.bf16.msra.mxu0 0
        %458 = vmatprep.subr.bf16.mxu0 0
        %459 = vmatpush1.bf16.msra.mxu0 0
        %460 = vmatprep.subr.bf16.mxu0 0
        %461 = vmatpush1.bf16.msra.mxu0 0
        %462 = vmatprep.subr.bf16.mxu0 0
        %463 = vmatpush1.bf16.msra.mxu0 0
        %464 = vmatprep.subr.bf16.mxu0 0
        %465 = vmatpush1.bf16.msra.mxu0 0
        %466 = vmatprep.mubr.bf16.mxu0 0
        %467 = vmatmul.mubr.bf16.gmra.mrb[0].mxu0 %v378
        %v468 = vpop.f32.mrb[0].mxu0
        %v469 = vadd.f32 %v360, %v468
        %v470 = vpop.f32.mrb[0].mxu0
        %v471 = vpop.f32.mrb[0].mxu0
        %v472 = vadd.f32 %v360, %v471
        %v473 = vpop.f32.mrb[0].mxu0
        %474 = vmatprep.mubr.bf16.mxu0 0
        %475 = vmatmul.mubr.bf16.gmra.mrb[0].mxu0 %v379
        %v476 = vpop.f32.mrb[0].mxu0
        %v477 = vadd.f32 %v360, %v476
        %v478 = vpop.f32.mrb[0].mxu0
        %v479 = vpop.f32.mrb[0].mxu0
        %v480 = vadd.f32 %v360, %v479
        %v481 = vpop.f32.mrb[0].mxu0
        %482 = vmatprep.mubr.bf16.mxu0 0
        %483 = vmatmul.mubr.bf16.gmra.mrb[0].mxu0 %v380
        %v484 = vpop.f32.mrb[0].mxu0
        %v485 = vadd.f32 %v360, %v484
        %v486 = vpop.f32.mrb[0].mxu0
        %v487 = vpop.f32.mrb[0].mxu0
        %v488 = vadd.f32 %v360, %v487
        %v489 = vpop.f32.mrb[0].mxu0
        %490 = vmatprep.mubr.bf16.mxu0 0
        %491 = vmatmul.mubr.bf16.gmra.mrb[0].mxu0 %v381
        %v492 = vpop.f32.mrb[0].mxu0
        %v493 = vadd.f32 %v360, %v492
        %v494 = vpop.f32.mrb[0].mxu0
        %v495 = vpop.f32.mrb[0].mxu0
        %v496 = vadd.f32 %v360, %v495
        %v497 = vpop.f32.mrb[0].mxu0
        %498 = vdwg.mxu0
        %v499 = vmax.f32 %v469, 0.0
        %v500 = vmax.f32 %v472, 0.0
        %v501 = vmax.f32 %v477, 0.0
        %v502 = vmax.f32 %v480, 0.0
        %v503 = vmax.f32 %v485, 0.0
        %v504 = vmax.f32 %v488, 0.0
        %v505 = vmax.f32 %v493, 0.0
        %v506 = vmax.f32 %v496, 0.0
        %v507 = vld [vmem:[#allocation2] sm:$0x1]
        %v508 = vadd.f32 %v499, %v500
        %v509 = vadd.f32 %v508, %v501
        %v510 = vadd.f32 %v509, %v502
        %v511 = vadd.f32 %v510, %v503
        %v512 = vadd.f32 %v511, %v504
        %v513 = vadd.f32 %v512, %v505
        %v514 = vadd.f32 %v513, %v506
        %v515 = vrot.slane %v514, 4
        %v516 = vadd.f32 %v514, %v515
        %v517 = vrot.slane %v516, 2
        %v518 = vadd.f32 %v516, %v517
        %v519 = vrot.slane %v518, 1
        %v520 = vadd.f32 %v518, %v519
        %v521 = vadd.f32 %v507, %v520
        %522 = vst [vmem:[#allocation2] sm:$0x1] %v521
        %p523 = scmp.eq.s32.totalorder %s33, 3
        // Predicated region
        $region57: #{tpu_custom_call.1} parent=39 // pred_check
          %p524 = pneg %p523
        $region58: #{tpu_custom_call.1} parent=39 // pred_check_branch
          %526 = sbr.rel (%p524) target = $region60
        $region59: #{tpu_custom_call.1} parent=39 // pred_region
          %v527 = vld [vmem:[#allocation2] sm:$0x1]
          %v528 = vmul.f32 %v527, 0.00390625
          %529 = vst [vmem:[%s323] sm:$0x1] %v528
          %v530 = vpack.c.bf16 %v528, %v528
          %v531 = vld [vmem:[#allocation8] sm:$0xf]
          %v532 = vld [vmem:[#allocation8 + $0x4] sm:$0xf]
          %v533 = vld [vmem:[#allocation8 + $0x8] sm:$0xf]
          %v534 = vld [vmem:[#allocation8 + $0xc] sm:$0xf]
          %v535 = vld [vmem:[#allocation8 + $0x10] sm:$0xf]
          %v536 = vld [vmem:[#allocation8 + $0x14] sm:$0xf]
          %v537 = vld [vmem:[#allocation8 + $0x18] sm:$0xf]
          %v538 = vld [vmem:[#allocation8 + $0x1c] sm:$0xf]
          %v539 = vld [vmem:[#allocation8 + $0x20] sm:$0xf]
          %v540 = vld [vmem:[#allocation8 + $0x24] sm:$0xf]
          %v541 = vld [vmem:[#allocation8 + $0x28] sm:$0xf]
          %v542 = vld [vmem:[#allocation8 + $0x2c] sm:$0xf]
          %v543 = vld [vmem:[#allocation8 + $0x30] sm:$0xf]
          %v544 = vld [vmem:[#allocation8 + $0x34] sm:$0xf]
          %v545 = vld [vmem:[#allocation8 + $0x38] sm:$0xf]
          %v546 = vld [vmem:[#allocation8 + $0x3c] sm:$0xf]
          %v547 = vld [vmem:[%s4] sm:$0x1]
          %v564 = vunpack.c.l.b16 %v531
          %v565 = vunpack.c.l.b16 %v532
          %v566 = vunpack.c.l.b16 %v533
          %v567 = vunpack.c.l.b16 %v534
          %v568 = vunpack.c.l.b16 %v535
          %v569 = vunpack.c.l.b16 %v536
          %v570 = vunpack.c.l.b16 %v537
          %v571 = vunpack.c.l.b16 %v538
          %v572 = vunpack.c.l.b16 %v539
          %v573 = vunpack.c.l.b16 %v540
          %v574 = vunpack.c.l.b16 %v541
          %v575 = vunpack.c.l.b16 %v542
          %v576 = vunpack.c.l.b16 %v543
          %v577 = vunpack.c.l.b16 %v544
          %v578 = vunpack.c.l.b16 %v545
          %v579 = vunpack.c.l.b16 %v546
          %v580 = vpack.c.b16 %v565, %v564
          %v581 = vpack.c.b16 %v567, %v566
          %v582 = vpack.c.b16 %v569, %v568
          %v583 = vpack.c.b16 %v571, %v570
          %v584 = vpack.c.b16 %v573, %v572
          %v585 = vpack.c.b16 %v575, %v574
          %v586 = vpack.c.b16 %v577, %v576
          %v587 = vpack.c.b16 %v579, %v578
          %596 = vmatprep.subr.bf16.mxu0 0
          %597 = vmatpush1.bf16.msra.mxu0 %v580
          %598 = vmatprep.subr.bf16.mxu0 0
          %599 = vmatpush1.bf16.msra.mxu0 %v581
          %600 = vmatprep.subr.bf16.mxu0 0
          %601 = vmatpush1.bf16.msra.mxu0 %v582
          %602 = vmatprep.subr.bf16.mxu0 0
          %603 = vmatpush1.bf16.msra.mxu0 %v583
          %604 = vmatprep.subr.bf16.mxu0 0
          %605 = vmatpush1.bf16.msra.mxu0 %v584
          %606 = vmatprep.subr.bf16.mxu0 0
          %607 = vmatpush1.bf16.msra.mxu0 %v585
          %608 = vmatprep.subr.bf16.mxu0 0
          %609 = vmatpush1.bf16.msra.mxu0 %v586
          %610 = vmatprep.subr.bf16.mxu0 0
          %611 = vmatpush1.bf16.msra.mxu0 %v587
          %612 = vmatprep.subr.bf16.mxu0 0
          %613 = vmatpush1.bf16.msra.mxu0 0
          %614 = vmatprep.subr.bf16.mxu0 0
          %615 = vmatpush1.bf16.msra.mxu0 0
          %616 = vmatprep.subr.bf16.mxu0 0
          %617 = vmatpush1.bf16.msra.mxu0 0
          %618 = vmatprep.subr.bf16.mxu0 0
          %619 = vmatpush1.bf16.msra.mxu0 0
          %620 = vmatprep.subr.bf16.mxu0 0
          %621 = vmatpush1.bf16.msra.mxu0 0
          %622 = vmatprep.subr.bf16.mxu0 0
          %623 = vmatpush1.bf16.msra.mxu0 0
          %624 = vmatprep.subr.bf16.mxu0 0
          %625 = vmatpush1.bf16.msra.mxu0 0
          %626 = vmatprep.subr.bf16.mxu0 0
          %627 = vmatpush1.bf16.msra.mxu0 0
          %628 = vmatprep.mubr.bf16.mxu0 0
          %629 = vmatmul.mubr.bf16.gmra.mrb[0].mxu0 %v530
          %v630 = vpop.f32.mrb[0].mxu0
          %v631 = vadd.f32 %v547, %v630
          %v632 = vpop.f32.mrb[0].mxu0
          %v633 = vpop.f32.mrb[0].mxu0
          %v634 = vpop.f32.mrb[0].mxu0
          %635 = vdwg.mxu0
          %636 = vst [vmem:[%s317] sm:$0x1] %v631
        $region60: #{tpu_custom_call.1} parent=39 // pred_fallthru
          _
        %s637 = sand.u32 %s160, 1
        %s638 = scalar_lea.sflag [#allocation5], %s637
        %s639 = sand.u32 %s160, 1
        %s640 = scalar_lea.vmem [#allocation9], %s639
        %s641 = sand.u32 %s186, 1
        %s642 = scalar_lea.sflag [#allocation11], %s641
        %s643 = sand.u32 %s186, 1
        %s644 = scalar_lea.vmem [#allocation10], %s643
        // Predicated region
        $region61: #{tpu_custom_call.1} parent=39 // pred_check
          %p645 = pneg %p170
        $region62: #{tpu_custom_call.1} parent=39 // pred_check_branch
          %647 = sbr.rel (%p645) target = $region64
        $region63: #{tpu_custom_call.1} parent=39 // pred_region
          %s649 = ssub.s32 16, 16
          %650 = vsyncadd %s638, %s649
          %s651 = smul.addr %s32, 16
          %s652 = scalar_lea.hbm %s5, %s651
          %s654 = sshll.u32 %s640, 4
          %s655 = int_to_ptr.vmem [resolvable:$true] %s654
          %657 = dma.vmem_to_hbm [thread:$0]  %s655, 16, %s652, %s638
        $region64: #{tpu_custom_call.1} parent=39 // pred_fallthru
          _
        // Predicated region
        $region65: #{tpu_custom_call.1} parent=39 // pred_check
          %p658 = pneg %p196
        $region66: #{tpu_custom_call.1} parent=39 // pred_check_branch
          %660 = sbr.rel (%p658) target = $region68
        $region67: #{tpu_custom_call.1} parent=39 // pred_region
          %s662 = ssub.s32 16, 16
          %663 = vsyncadd %s642, %s662
          %s664 = smul.addr %s32, 16
          %s665 = scalar_lea.hbm %s6, %s664
          %s667 = sshll.u32 %s644, 4
          %s668 = int_to_ptr.vmem [resolvable:$true] %s667
          %670 = dma.vmem_to_hbm [thread:$0]  %s668, 16, %s665, %s642
        $region68: #{tpu_custom_call.1} parent=39 // pred_fallthru
          _
      $region40: #{tpu_custom_call.1} parent=5 // pred_fallthru
        _
      %p671 = scmp.le.s32.totalorder 2, %s23
      // Predicated region
      $region69: #{tpu_custom_call.1} parent=5 // pred_check
        %p672 = pneg %p671
      $region70: #{tpu_custom_call.1} parent=5 // pred_check_branch
        %674 = sbr.rel (%p672) target = $region72
      $region71: #{tpu_custom_call.1} parent=5 // pred_region
        %s675 = ssub.s32 %s23, 2
        // Predicated region
        $region73: #{tpu_custom_call.1} parent=71 // pred_check
          %p676 = pneg %p176
        $region74: #{tpu_custom_call.1} parent=71 // pred_check_branch
          %678 = sbr.rel (%p676) target = $region76
        $region75: #{tpu_custom_call.1} parent=71 // pred_region
          %s679 = sand.u32 %s161, 1
          %s680 = scalar_lea.sflag [#allocation5], %s679
          %s681 = sand.u32 %s161, 1
          %s682 = scalar_lea.vmem [#allocation9], %s681
          %683 = dma.done %s680, 16
        $region76: #{tpu_custom_call.1} parent=71 // pred_fallthru
          _
        // Predicated region
        $region77: #{tpu_custom_call.1} parent=71 // pred_check
          %p684 = pneg %p202
        $region78: #{tpu_custom_call.1} parent=71 // pred_check_branch
          %686 = sbr.rel (%p684) target = $region80
        $region79: #{tpu_custom_call.1} parent=71 // pred_region
          %s687 = sand.u32 %s187, 1
          %s688 = scalar_lea.sflag [#allocation11], %s687
          %s689 = sand.u32 %s187, 1
          %s690 = scalar_lea.vmem [#allocation10], %s689
          %691 = dma.done %s688, 16
        $region80: #{tpu_custom_call.1} parent=71 // pred_fallthru
          _
      $region72: #{tpu_custom_call.1} parent=5 // pred_fallthru
        _
    $region6: #{tpu_custom_call.1} parent=1 // loop_footer
      %s27 = sadd.s32 1, %s23
    $region7: #{tpu_custom_call.1} parent=1 // loop_footer_branch
      %22 = sbr.rel target = $region3
    $region8: #{tpu_custom_call.1} parent=1 // loop_exit
      _
    %692 = vsyncpa [#allocation4], 1
    %s693 = scalar_lea.sflag [#allocation4], 1
    %694 = vsyncpa %s693, 1
    %695 = vsyncpa [#allocation7], 1
    %696 = vsyncpa [#allocation5], 1
    %s697 = scalar_lea.sflag [#allocation5], 1
    %698 = vsyncpa %s697, 1
    %699 = vsyncpa [#allocation11], 1
    %s700 = scalar_lea.sflag [#allocation11], 1
    %701 = vsyncpa %s700, 1

</llo_original>
